<compile_context>
chip_gen: v7x
topology: tpu7x:2x2x1
jax: 0.10.0
libtpu: 0.0.40
codegen_flags: <defaults>
</compile_context>

<pallas_src>
import jax
import jax.numpy as jnp
import numpy as np
from jax.experimental import pallas as pl
from jax.experimental.pallas import tpu as pltpu


# ---------------------------------------------------------------------------
# Kernel: one tiled matmul per grid step.  The whole conv (all taps) + scale +
# both biases are encoded in the operands, so there is no epilogue and no
# accumulator carried across an unrolled loop (review items 1 & 2 & 7).
# ---------------------------------------------------------------------------
def _matmul_kernel(x_ref, w_ref, o_ref):
    # x_ref: (R, K*C+2) bf16   w_ref: (K*C+2, O) bf16   o_ref: (R, O) bf16
    o_ref[...] = jnp.dot(
        x_ref[...], w_ref[...], preferred_element_type=jnp.float32
    ).astype(o_ref.dtype)


# ---------------------------------------------------------------------------
# Hardware / tiling helpers
# ---------------------------------------------------------------------------
def _round_up(v, m):
    return -(-v // m) * m


def _tpu_caps():
    """(vmem_capacity_bytes, tensorcores_per_chip) -- best effort, safe fallbacks."""
    kind = ""
    try:
        kind = jax.devices()[0].device_kind.lower()
    except Exception:
        pass
    vmem = None
    try:
        vmem = int(pltpu.get_tpu_info().vmem_capacity_bytes)
    except Exception:
        vmem = None
    if not vmem or vmem <= 0:
        # v7x has 64 MiB of VMEM per TensorCore; v5e/v6e have 128 MiB.
        vmem = (64 if "v7" in kind else 128) * 1024 * 1024
    # 2 TensorCores per chip on v7x (and megacore v4/v5p); 1 on v5e/v6e.
    num_cores = 2 if any(t in kind for t in ("v7", "v4", "v5p")) else 1
    return vmem, num_cores


def _pick_row_block(rows, kc, o, block_budget_bytes, num_cores):
    """Rows (M) per grid step.

    Target ~512 rows (amortize ~0.35us/step, fill the 256-deep MXU), shrink while
    the lane-padded double-buffered x block + out block + weights exceed the VMEM
    budget, never exceed the (8-aligned) total row count, and only enforce
    ">= num_cores grid steps" on multi-TensorCore parts (review items 4/5/6).
    """
    lanes_x = _round_up(max(kc, 1), 128)
    lanes_o = _round_up(max(o, 1), 128)
    w_bytes = 2 * lanes_x * lanes_o * 2          # weights, worst case 2 buffers, bf16
    r = 512
    while r > 8 and (2 * r * lanes_x * 2 + 2 * r * lanes_o * 2 + w_bytes) > block_budget_bytes:
        r //= 2
    r = min(r, _round_up(rows, 8))
    while num_cores > 1 and r > 8 and pl.cdiv(rows, r) < num_cores:
        r = max(8, _round_up(r // 2, 8))
    return max(8, r)


def _run_conv_matmul(x2, w2, r, grid_steps, rows_p, o, vmem_limit, single_buffer_w):
    kc = x2.shape[1]
    w_kwargs = {}
    if single_buffer_w:
        # Grid-invariant weights: one pipeline buffer is enough (review item 8).
        w_kwargs = dict(pipeline_mode=pl.Buffered(1))
    return pl.pallas_call(
        _matmul_kernel,
        out_shape=jax.ShapeDtypeStruct((rows_p, o), jnp.bfloat16),
        grid=(grid_steps,),
        in_specs=[
            pl.BlockSpec((r, kc), lambda i: (i, 0)),            # im2col row block
            pl.BlockSpec((kc, o), lambda i: (0, 0), **w_kwargs),  # weights (resident)
        ],
        out_specs=pl.BlockSpec((r, o), lambda i: (i, 0)),
        compiler_params=pltpu.CompilerParams(
            dimension_semantics=("parallel",),
            vmem_limit_bytes=vmem_limit,
        ),
    )(x2, w2)


# ---------------------------------------------------------------------------
# Public wrapper (mirrors the PyTorch forward)
# ---------------------------------------------------------------------------
def smoothed_dilated_conv1d_gi(x, conv_w, conv_b, fix_w, bias_block,
                               kernel_size, dilation):
    """x: (B, C, T) f32; conv_w: (O, C, K); conv_b: (O,);
    fix_w: (dilation, dilation); bias_block: (1, O, 1).  Returns (B, O, T) f32.
    Requires O == C (implicitly required by the PyTorch module's .view)."""
    B, C, T = x.shape
    O, Cw, K = conv_w.shape
    assert K == kernel_size and Cw == C and O == C

    pad_t = (-T) % dilation
    Tp = T + pad_t
    L = Tp // dilation
    G = B * dilation
    rows = B * Tp                      # == G * L ; flat (group, block-time) rows
    bf16 = jnp.bfloat16

    # ---- wrapper glue.  Cast to bf16 early so every pass moves half the bytes;
    #      the transpose / pads / per-row scale fuse into the one materialized
    #      im2col concat pass (review item 9, trade-off documented above). -------
    xt = jnp.transpose(x, (0, 2, 1)).astype(bf16)        # (B, T, C)
    xt = jnp.pad(xt, ((0, 0), (pad_t, 0), (0, 0)))       # left-pad time -> (B, Tp, C)
    xg = xt.reshape(G, L, C)                             # == torch .view(B*dilation, L, C)
    xg = jnp.pad(xg, ((0, 0), (K - 1, 0), (0, 0)))       # per-group causal pad

    # torch.chunk scales rows [i*B, (i+1)*B) by col_sums[i] -> per flat row r
    # (group g = r // L) the scale is col_sums[g // B].
    col_sums = jnp.sum(fix_w, axis=0).astype(jnp.float32)            # (dilation,)
    scale_row = col_sums[(jnp.arange(rows) // L) // B].astype(bf16)  # (rows,)

    # im2col: taps folded onto the contraction axis (tap-major, channel-minor),
    # scale folded into the rows, plus two bias columns [scale, 1] so that
    #   y = [scale*x_taps | scale | 1] @ [[W_taps], [conv_b], [bias_block]]
    #     = scale*(conv + conv_b) + bias_block           (whole epilogue on the MXU)
    taps = [xg[:, k:k + L, :].reshape(rows, C) for k in range(K)]    # XLA-side slices (fine here)
    x_i2c = jnp.concatenate(taps, axis=-1) * scale_row[:, None]      # (rows, K*C)
    x2 = jnp.concatenate(
        [x_i2c, scale_row[:, None], jnp.ones((rows, 1), bf16)], axis=-1)  # (rows, K*C+2)

    w2 = jnp.concatenate(
        [jnp.transpose(conv_w, (2, 1, 0)).reshape(K * C, O),   # (k, c)-major rows
         conv_b[None, :],
         bias_block.reshape(1, O)], axis=0).astype(bf16)       # (K*C+2, O)

    kc2 = K * C + 2
    vmem_capacity, num_cores = _tpu_caps()
    # 32 MiB limit on v7x (64 MiB physical), 64 MiB on v5e/v6e (128 MiB physical).
    vmem_limit = int(min(64 * 1024 * 1024, max(32 * 1024 * 1024, vmem_capacity // 2)))
    block_budget = (vmem_limit * 3) // 4
    r = _pick_row_block(rows, kc2, O, block_budget, num_cores)
    rows_p = _round_up(rows, r)
    if rows_p != rows:
        x2 = jnp.pad(x2, ((0, rows_p - rows), (0, 0)))   # zero rows -> sliced off below
    grid_steps = rows_p // r

    try:
        y2 = _run_conv_matmul(x2, w2, r, grid_steps, rows_p, O, vmem_limit, True)
    except Exception:
        # pl.Buffered(1) not accepted by this jax/Mosaic version -> default buffering.
        y2 = _run_conv_matmul(x2, w2, r, grid_steps, rows_p, O, vmem_limit, False)

    # Undo the flat-row layout (free reshape), keep the FIRST T steps of the padded
    # sequence (exactly as the torch module does) and return NCT in f32.
    out = y2[:rows].reshape(B, Tp, O)[:, :T, :]
    # TODO(synk): for production O < 128 a transposed (O-on-sublane, rows-on-lane)
    # output tile would give lane-dense stores; kept row-major here (it only pays
    # when O < 128 and would force N-on-sublane matmuls).  The final NTC->NCT
    # transpose stays in XLA; it now reads bf16 and the f32 cast fuses into it.
    return jnp.transpose(out, (0, 2, 1)).astype(jnp.float32)


# ---------------------------------------------------------------------------
# Pure-JAX f32 reference (transcription of the PyTorch forward) for verification.
# ---------------------------------------------------------------------------
def reference_forward(x, conv_w, conv_b, fix_w, bias_block, K, dilation):
    B, C, T = x.shape
    O = conv_w.shape[0]
    pad_t = (-T) % dilation
    Tp = T + pad_t
    L = Tp // dilation
    G = B * dilation
    xp = jnp.pad(x, ((0, 0), (0, 0), (pad_t, 0)))
    xg = jnp.transpose(xp, (0, 2, 1)).reshape(G, L, C)
    xg = jnp.pad(xg, ((0, 0), (K - 1, 0), (0, 0)))
    y = sum(jnp.einsum('gtc,oc->gto', xg[:, k:k + L, :], conv_w[:, :, k])
            for k in range(K)) + conv_b[None, None, :]
    col_sums = jnp.sum(fix_w, axis=0)
    y = y * col_sums[jnp.arange(G) // B][:, None, None]
    out = y.reshape(B, Tp, O)[:, :T, :]
    return jnp.transpose(out, (0, 2, 1)) + bias_block


if __name__ == "__main__":
    key = jax.random.PRNGKey(0)
    B, C, T = 2, 16, 30          # T not divisible by dilation -> exercises pad_t
    K, dilation = 3, 4
    O = C                        # module requires out_channels == in_channels

    k1, k2, k3, k4, k5 = jax.random.split(key, 5)
    x = jax.random.normal(k1, (B, C, T), jnp.float32)
    conv_w = 0.1 * jax.random.normal(k2, (O, C, K), jnp.float32)
    conv_b = 0.1 * jax.random.normal(k3, (O,), jnp.float32)
    # __init__ uses eye / zeros; perturb slightly so the scale & bias paths matter.
    fix_w = jnp.eye(dilation, dtype=jnp.float32) + \
        0.05 * jax.random.normal(k4, (dilation, dilation), jnp.float32)
    bias_block = 0.1 * jax.random.normal(k5, (1, O, 1), jnp.float32)

    out = smoothed_dilated_conv1d_gi(x, conv_w, conv_b, fix_w, bias_block, K, dilation)
    out = jax.block_until_ready(out)
    assert out.shape == (B, O, T)

    ref = reference_forward(x, conv_w, conv_b, fix_w, bias_block, K, dilation)
    # bf16 inputs / f32 accumulation -> relaxed tolerance vs the f32 reference.
    np.testing.assert_allclose(np.asarray(out), np.asarray(ref), rtol=3e-2, atol=3e-2)
    print("KERNEL_OK")
</pallas_src>

<mosaic_0001>
module attributes {stable_mosaic.version = 11 : i64} {
  func.func @_matmul_kernel(%arg0: i32, %arg1: memref<64x50xbf16, #tpu.memory_space<vmem>>, %arg2: memref<50x16xbf16, #tpu.memory_space<vmem>>, %arg3: memref<64x16xbf16, #tpu.memory_space<vmem>>) attributes {dimension_semantics = [#tpu.dimension_semantics<parallel>], iteration_bounds = array<i64: 1>, scalar_prefetch = 0 : i64, scratch_operands = 0 : i64, tpu.core_type = #tpu.core_type<tc>, window_params = [{transform_indices = @transform_0, window_bounds = array<i64: 64, 50>}, {pipeline_mode = #tpu.pipeline_mode<synchronous>, transform_indices = @transform_1, window_bounds = array<i64: 50, 16>}, {transform_indices = @transform_2, window_bounds = array<i64: 64, 16>}]} {
    %c0 = arith.constant 0 : index
    %c0_0 = arith.constant 0 : index
    %0 = vector.load %arg1[%c0, %c0_0] : memref<64x50xbf16, #tpu.memory_space<vmem>>, vector<64x50xbf16>
    %c0_1 = arith.constant 0 : index
    %c0_2 = arith.constant 0 : index
    %1 = vector.load %arg2[%c0_1, %c0_2] : memref<50x16xbf16, #tpu.memory_space<vmem>>, vector<50x16xbf16>
    %cst = arith.constant dense<0.000000e+00> : vector<64x16xf32>
    %2 = tpu.matmul %0, %1, %cst {dimension_numbers = #tpu.dot_dimension_numbers<[1], [0], [0], [1], [0, 0, 1, 1], [], []>} : vector<64x50xbf16>, vector<50x16xbf16>, vector<64x16xf32> -> vector<64x16xf32>
    %3 = arith.truncf %2 : vector<64x16xf32> to vector<64x16xbf16>
    %c0_3 = arith.constant 0 : index
    %c0_4 = arith.constant 0 : index
    %4 = vector.load %arg3[%c0_3, %c0_4] : memref<64x16xbf16, #tpu.memory_space<vmem>>, vector<64x16xbf16>
    tpu.vector_store %arg3[%c0_3, %c0_4], %3 {strides = array<i32>} : memref<64x16xbf16, #tpu.memory_space<vmem>>, vector<64x16xbf16>,
    return
  }
  func.func @transform_0(%arg0: i32) -> (i32, i32) {
    %c0_i32 = arith.constant 0 : i32
    %c0_i32_0 = arith.constant 0 : i32
    return %arg0, %c0_i32 : i32, i32
  }
  func.func @transform_1(%arg0: i32) -> (i32, i32) {
    %c0_i32 = arith.constant 0 : i32
    %c0_i32_0 = arith.constant 0 : i32
    %c0_i32_1 = arith.constant 0 : i32
    return %c0_i32, %c0_i32_0 : i32, i32
  }
  func.func @transform_2(%arg0: i32) -> (i32, i32) {
    %c0_i32 = arith.constant 0 : i32
    %c0_i32_0 = arith.constant 0 : i32
    return %arg0, %c0_i32 : i32, i32
  }
}

module attributes {stable_mosaic.version = 11 : i64} {
  func.func @_matmul_kernel(%arg0: i32, %arg1: memref<64x50xbf16, #tpu.memory_space<vmem>>, %arg2: memref<50x16xbf16, #tpu.memory_space<vmem>>, %arg3: memref<64x16xbf16, #tpu.memory_space<vmem>>) attributes {dimension_semantics = [#tpu.dimension_semantics<parallel>], iteration_bounds = array<i64: 1>, scalar_prefetch = 0 : i64, scratch_operands = 0 : i64, tpu.core_type = #tpu.core_type<tc>, window_params = [{transform_indices = @transform_0, window_bounds = array<i64: 64, 50>}, {pipeline_mode = #tpu.pipeline_mode<synchronous>, transform_indices = @transform_1, window_bounds = array<i64: 50, 16>}, {transform_indices = @transform_2, window_bounds = array<i64: 64, 16>}]} {
    %c0 = arith.constant 0 : index
    %c0_0 = arith.constant 0 : index
    %0 = vector.load %arg1[%c0, %c0_0] : memref<64x50xbf16, #tpu.memory_space<vmem>>, vector<64x50xbf16>
    %c0_1 = arith.constant 0 : index
    %c0_2 = arith.constant 0 : index
    %1 = vector.load %arg2[%c0_1, %c0_2] : memref<50x16xbf16, #tpu.memory_space<vmem>>, vector<50x16xbf16>
    %cst = arith.constant dense<0.000000e+00> : vector<64x16xf32>
    %2 = tpu.matmul %0, %1, %cst {dimension_numbers = #tpu.dot_dimension_numbers<[1], [0], [0], [1], [0, 0, 1, 1], [], []>} : vector<64x50xbf16>, vector<50x16xbf16>, vector<64x16xf32> -> vector<64x16xf32>
    %3 = arith.truncf %2 : vector<64x16xf32> to vector<64x16xbf16>
    %c0_3 = arith.constant 0 : index
    %c0_4 = arith.constant 0 : index
    %4 = vector.load %arg3[%c0_3, %c0_4] : memref<64x16xbf16, #tpu.memory_space<vmem>>, vector<64x16xbf16>
    tpu.vector_store %arg3[%c0_3, %c0_4], %3 {strides = array<i32>} : memref<64x16xbf16, #tpu.memory_space<vmem>>, vector<64x16xbf16>,
    return
  }
  func.func @transform_0(%arg0: i32) -> (i32, i32) {
    %c0_i32 = arith.constant 0 : i32
    %c0_i32_0 = arith.constant 0 : i32
    return %arg0, %c0_i32 : i32, i32
  }
  func.func @transform_1(%arg0: i32) -> (i32, i32) {
    %c0_i32 = arith.constant 0 : i32
    %c0_i32_0 = arith.constant 0 : i32
    %c0_i32_1 = arith.constant 0 : i32
    return %c0_i32, %c0_i32_0 : i32, i32
  }
  func.func @transform_2(%arg0: i32) -> (i32, i32) {
    %c0_i32 = arith.constant 0 : i32
    %c0_i32_0 = arith.constant 0 : i32
    return %arg0, %c0_i32 : i32, i32
  }
}

</mosaic_0001>

<llo_original>
// kernel: tpu_custom_call.1
$region0: #{tpu_custom_call.1}
  #allocation0 [shape = 'u32[]', space=smem, size = 0x4, offset = 0x4, fixed_abs, tag = 'smem constant byte address 0x4 - core index']
  #allocation1 [shape = 'u32[144,128]{1,0:T(1,128)}', space=vmem, size = 0x12000, scoped, tag = 'internal scratch']
  %s0 = inlined_call_operand.hbm [shape: bf16[64,50], index: 0, kind: input, shape index: {}]
  %s1 = inlined_call_operand.hbm [shape: bf16[50,16], index: 1, kind: input, shape index: {}]
  %s2 = inlined_call_operand.hbm [shape: bf16[64,16], index: 2, kind: output, shape index: {}]
  %s3 = sld [smem:[#allocation0]]
  $region26: #{tpu_custom_call.1} parent=0
    _
  %s5 = ssub.s32 1, %s3
  %s6 = scalar_select 0, %s5, %s3
  $region1: #{tpu_custom_call.1} parent=0
    #allocation2 [shape = 'u8[16384]{0}', space=vmem, size = 0x4000, scoped, tag = 'input window, operand 0, single buffered']
    #allocation3 [shape = 's32[1]{0}', space=sflag, size = 0x4, scoped, tag = 'scoped memory for tpu_custom_call.1']
    #allocation4 [shape = 's32[1]{0}', space=sflag, size = 0x4, scoped, tag = 'scoped memory for tpu_custom_call.1']
    #allocation5 [shape = 'u8[14336]{0}', space=vmem, size = 0x3800, scoped, tag = 'input window, operand 1, single buffered']
    #allocation6 [shape = 's32[1]{0}', space=sflag, size = 0x4, scoped, tag = 'scoped memory for tpu_custom_call.1']
    #allocation7 [shape = 'u8[16384]{0}', space=vmem, size = 0x4000, scoped, tag = 'output window, operand 0, single buffered']
    %7 = vsyncpa [#allocation3], 0
    %8 = vsyncpa [#allocation6], 0
    %9 = vsyncpa [#allocation4], 0
    // Predicated region
    $region2: #{tpu_custom_call.1} parent=1 // pred_check
      _
    $region3: #{tpu_custom_call.1} parent=1 // pred_check_branch
      %11 = sbr.rel (0) target = $region5
    $region4: #{tpu_custom_call.1} parent=1 // pred_region
      %s13 = ssub.s32 512, 512
      %14 = vsyncadd [#allocation3], %s13
      %s15 = sshll.u32 [#allocation2], 4
      %s16 = int_to_ptr.vmem [resolvable:$true] %s15
      %21 = dma.hbm_to_vmem [thread:$0]  %s0, 512, %s16, [#allocation3], 64, 64, 4
    $region5: #{tpu_custom_call.1} parent=1 // pred_fallthru
      _
    // Predicated region
    $region6: #{tpu_custom_call.1} parent=1 // pred_check
      _
    $region7: #{tpu_custom_call.1} parent=1 // pred_check_branch
      %23 = sbr.rel (0) target = $region9
    $region8: #{tpu_custom_call.1} parent=1 // pred_region
      %s25 = ssub.s32 448, 448
      %26 = vsyncadd [#allocation6], %s25
      %s27 = sshll.u32 [#allocation5], 4
      %s28 = int_to_ptr.vmem [resolvable:$true] %s27
      %33 = dma.hbm_to_vmem [thread:$0]  %s1, 448, %s28, [#allocation6], 64, 64, 4
    $region9: #{tpu_custom_call.1} parent=1 // pred_fallthru
      _
    // Predicated region
    $region10: #{tpu_custom_call.1} parent=1 // pred_check
      _
    $region11: #{tpu_custom_call.1} parent=1 // pred_check_branch
      %35 = sbr.rel (0) target = $region13
    $region12: #{tpu_custom_call.1} parent=1 // pred_region
      %36 = dma.done [#allocation3], 512
    $region13: #{tpu_custom_call.1} parent=1 // pred_fallthru
      _
    // Predicated region
    $region14: #{tpu_custom_call.1} parent=1 // pred_check
      _
    $region15: #{tpu_custom_call.1} parent=1 // pred_check_branch
      %38 = sbr.rel (0) target = $region17
    $region16: #{tpu_custom_call.1} parent=1 // pred_region
      %39 = dma.done [#allocation6], 448
    $region17: #{tpu_custom_call.1} parent=1 // pred_fallthru
      _
    %v41 = vld [vmem:[#allocation2] sm:$0xf]
    %v42 = vld [vmem:[#allocation2 + $0x4] sm:$0xf]
    %v43 = vld [vmem:[#allocation2 + $0x8] sm:$0xf]
    %v44 = vld [vmem:[#allocation2 + $0xc] sm:$0xf]
    %v45 = vld [vmem:[#allocation2 + $0x10] sm:$0xf]
    %v46 = vld [vmem:[#allocation2 + $0x14] sm:$0xf]
    %v47 = vld [vmem:[#allocation2 + $0x18] sm:$0xf]
    %v48 = vld [vmem:[#allocation2 + $0x1c] sm:$0xf]
    %v49 = vld [vmem:[#allocation5] sm:$0xf]
    %v50 = vld [vmem:[#allocation5 + $0x4] sm:$0xf]
    %v51 = vld [vmem:[#allocation5 + $0x8] sm:$0xf]
    %v52 = vld [vmem:[#allocation5 + $0xc] sm:$0xf]
    %v53 = vld [vmem:[#allocation5 + $0x10] sm:$0xf]
    %v54 = vld [vmem:[#allocation5 + $0x14] sm:$0xf]
    %v55 = vld [vmem:[#allocation5 + $0x18] sm:$0x1]
    %v64 = vunpack.c.l.b16 %v41
    %v65 = vunpack.c.l.b16 %v42
    %v66 = vunpack.c.l.b16 %v43
    %v67 = vunpack.c.l.b16 %v44
    %v68 = vunpack.c.l.b16 %v45
    %v69 = vunpack.c.l.b16 %v46
    %v70 = vunpack.c.l.b16 %v47
    %v71 = vunpack.c.l.b16 %v48
    %v72 = vpack.c.b16 %v65, %v64
    %v73 = vpack.c.b16 %v67, %v66
    %v74 = vpack.c.b16 %v69, %v68
    %v75 = vpack.c.b16 %v71, %v70
    %v83 = vunpack.c.l.b16 %v49
    %v84 = vunpack.c.l.b16 %v50
    %v85 = vunpack.c.l.b16 %v51
    %v86 = vunpack.c.l.b16 %v52
    %v87 = vunpack.c.l.b16 %v53
    %v88 = vunpack.c.l.b16 %v54
    %v89 = vunpack.c.l.b16 %v55
    %v90 = vpack.c.b16 %v84, %v83
    %v91 = vpack.c.b16 %v86, %v85
    %v92 = vpack.c.b16 %v88, %v87
    %v93 = vpack.c.b16 %v89, %v89
    %vm97 = vcmask 408576
    %v99 = vsel %vm97, %v72, 0
    %v102 = vsel %vm97, %v73, 0
    %v105 = vsel %vm97, %v74, 0
    %v108 = vsel %vm97, %v75, 0
    %vm110 = vcmask 1040384
    %v112 = vsel %vm110, %v93, 0
    %114 = vmatprep.subr.bf16.mxu0 0
    %115 = vmatpush1.bf16.msra.mxu0 %v90
    %116 = vmatprep.subr.bf16.mxu0 0
    %117 = vmatpush1.bf16.msra.mxu0 %v91
    %118 = vmatprep.subr.bf16.mxu0 0
    %119 = vmatpush1.bf16.msra.mxu0 %v92
    %120 = vmatprep.subr.bf16.mxu0 0
    %121 = vmatpush1.bf16.msra.mxu0 %v112
    %122 = vmatprep.subr.bf16.mxu0 0
    %123 = vmatpush1.bf16.msra.mxu0 0
    %124 = vmatprep.subr.bf16.mxu0 0
    %125 = vmatpush1.bf16.msra.mxu0 0
    %126 = vmatprep.subr.bf16.mxu0 0
    %127 = vmatpush1.bf16.msra.mxu0 0
    %128 = vmatprep.subr.bf16.mxu0 0
    %129 = vmatpush1.bf16.msra.mxu0 0
    %130 = vmatprep.subr.bf16.mxu0 0
    %131 = vmatpush1.bf16.msra.mxu0 0
    %132 = vmatprep.subr.bf16.mxu0 0
    %133 = vmatpush1.bf16.msra.mxu0 0
    %134 = vmatprep.subr.bf16.mxu0 0
    %135 = vmatpush1.bf16.msra.mxu0 0
    %136 = vmatprep.subr.bf16.mxu0 0
    %137 = vmatpush1.bf16.msra.mxu0 0
    %138 = vmatprep.subr.bf16.mxu0 0
    %139 = vmatpush1.bf16.msra.mxu0 0
    %140 = vmatprep.subr.bf16.mxu0 0
    %141 = vmatpush1.bf16.msra.mxu0 0
    %142 = vmatprep.subr.bf16.mxu0 0
    %143 = vmatpush1.bf16.msra.mxu0 0
    %144 = vmatprep.subr.bf16.mxu0 0
    %145 = vmatpush1.bf16.msra.mxu0 0
    %146 = vmatprep.mubr.bf16.mxu0 0
    %147 = vmatmul.mubr.bf16.gmra.mrb[0].mxu0 %v99
    %v148 = vpop.f32.mrb[0].mxu0
    %v149 = vadd.f32 0.0, %v148
    %v150 = vpop.f32.mrb[0].mxu0
    %v151 = vpop.f32.mrb[0].mxu0
    %v152 = vadd.f32 0.0, %v151
    %v153 = vpop.f32.mrb[0].mxu0
    %154 = vmatprep.mubr.bf16.mxu0 0
    %155 = vmatmul.mubr.bf16.gmra.mrb[0].mxu0 %v102
    %v156 = vpop.f32.mrb[0].mxu0
    %v157 = vadd.f32 0.0, %v156
    %v158 = vpop.f32.mrb[0].mxu0
    %v159 = vpop.f32.mrb[0].mxu0
    %v160 = vadd.f32 0.0, %v159
    %v161 = vpop.f32.mrb[0].mxu0
    %162 = vmatprep.mubr.bf16.mxu0 0
    %163 = vmatmul.mubr.bf16.gmra.mrb[0].mxu0 %v105
    %v164 = vpop.f32.mrb[0].mxu0
    %v165 = vadd.f32 0.0, %v164
    %v166 = vpop.f32.mrb[0].mxu0
    %v167 = vpop.f32.mrb[0].mxu0
    %v168 = vadd.f32 0.0, %v167
    %v169 = vpop.f32.mrb[0].mxu0
    %170 = vmatprep.mubr.bf16.mxu0 0
    %171 = vmatmul.mubr.bf16.gmra.mrb[0].mxu0 %v108
    %v172 = vpop.f32.mrb[0].mxu0
    %v173 = vadd.f32 0.0, %v172
    %v174 = vpop.f32.mrb[0].mxu0
    %v175 = vpop.f32.mrb[0].mxu0
    %v176 = vadd.f32 0.0, %v175
    %v177 = vpop.f32.mrb[0].mxu0
    %178 = vdwg.mxu0
    %v179 = vpack.c.bf16 %v152, %v149
    %v180 = vpack.c.bf16 %v160, %v157
    %v181 = vpack.c.bf16 %v168, %v165
    %v182 = vpack.c.bf16 %v176, %v173
    %v187 = vunpack.c.l.b16 %v179
    %v188 = vunpack.c.h.b16 %v179
    %v189 = vunpack.c.l.b16 %v180
    %v190 = vunpack.c.h.b16 %v180
    %v191 = vunpack.c.l.b16 %v181
    %v192 = vunpack.c.h.b16 %v181
    %v193 = vunpack.c.l.b16 %v182
    %v194 = vunpack.c.h.b16 %v182
    %v195 = vpack.c.b16 %v187, %v187
    %v196 = vpack.c.b16 %v188, %v188
    %v197 = vpack.c.b16 %v189, %v189
    %v198 = vpack.c.b16 %v190, %v190
    %v199 = vpack.c.b16 %v191, %v191
    %v200 = vpack.c.b16 %v192, %v192
    %v201 = vpack.c.b16 %v193, %v193
    %v202 = vpack.c.b16 %v194, %v194
    %vm211 = vcmask 125952
    %212 = vst.msk [vmem:[#allocation7] sm:$0xf] %vm211, %v195
    %213 = vst.msk [vmem:[#allocation7 + $0x4] sm:$0xf] %vm211, %v196
    %214 = vst.msk [vmem:[#allocation7 + $0x8] sm:$0xf] %vm211, %v197
    %215 = vst.msk [vmem:[#allocation7 + $0xc] sm:$0xf] %vm211, %v198
    %216 = vst.msk [vmem:[#allocation7 + $0x10] sm:$0xf] %vm211, %v199
    %217 = vst.msk [vmem:[#allocation7 + $0x14] sm:$0xf] %vm211, %v200
    %218 = vst.msk [vmem:[#allocation7 + $0x18] sm:$0xf] %vm211, %v201
    %219 = vst.msk [vmem:[#allocation7 + $0x1c] sm:$0xf] %vm211, %v202
    // Predicated region
    $region18: #{tpu_custom_call.1} parent=1 // pred_check
      _
    $region19: #{tpu_custom_call.1} parent=1 // pred_check_branch
      %221 = sbr.rel (0) target = $region21
    $region20: #{tpu_custom_call.1} parent=1 // pred_region
      %s223 = ssub.s32 512, 512
      %224 = vsyncadd [#allocation4], %s223
      %s225 = sshll.u32 [#allocation7], 4
      %s226 = int_to_ptr.vmem [resolvable:$true] %s225
      %231 = dma.vmem_to_hbm [thread:$0]  %s226, 512, %s2, [#allocation4], 64, 64, 4
    $region21: #{tpu_custom_call.1} parent=1 // pred_fallthru
      _
    // Predicated region
    $region22: #{tpu_custom_call.1} parent=1 // pred_check
      _
    $region23: #{tpu_custom_call.1} parent=1 // pred_check_branch
      %233 = sbr.rel (0) target = $region25
    $region24: #{tpu_custom_call.1} parent=1 // pred_region
      %234 = dma.done [#allocation4], 512
    $region25: #{tpu_custom_call.1} parent=1 // pred_fallthru
      _
    %235 = vsyncpa [#allocation3], 1
    %236 = vsyncpa [#allocation6], 1
    %237 = vsyncpa [#allocation4], 1

// kernel: tpu_custom_call.1
$region0: #{tpu_custom_call.1}
  #allocation0 [shape = 'u32[]', space=smem, size = 0x4, offset = 0x4, fixed_abs, tag = 'smem constant byte address 0x4 - core index']
  #allocation1 [shape = 'u32[144,128]{1,0:T(1,128)}', space=vmem, size = 0x12000, scoped, tag = 'internal scratch']
  %s0 = inlined_call_operand.hbm [shape: bf16[64,50], index: 0, kind: input, shape index: {}]
  %s1 = inlined_call_operand.hbm [shape: bf16[50,16], index: 1, kind: input, shape index: {}]
  %s2 = inlined_call_operand.hbm [shape: bf16[64,16], index: 2, kind: output, shape index: {}]
  %s3 = sld [smem:[#allocation0]]
  $region26: #{tpu_custom_call.1} parent=0
    _
  %s5 = ssub.s32 1, %s3
  %s6 = scalar_select 0, %s5, %s3
  $region1: #{tpu_custom_call.1} parent=0
    #allocation2 [shape = 'u8[16384]{0}', space=vmem, size = 0x4000, scoped, tag = 'input window, operand 0, single buffered']
    #allocation3 [shape = 's32[1]{0}', space=sflag, size = 0x4, scoped, tag = 'scoped memory for tpu_custom_call.1']
    #allocation4 [shape = 's32[1]{0}', space=sflag, size = 0x4, scoped, tag = 'scoped memory for tpu_custom_call.1']
    #allocation5 [shape = 'u8[14336]{0}', space=vmem, size = 0x3800, scoped, tag = 'input window, operand 1, single buffered']
    #allocation6 [shape = 's32[1]{0}', space=sflag, size = 0x4, scoped, tag = 'scoped memory for tpu_custom_call.1']
    #allocation7 [shape = 'u8[16384]{0}', space=vmem, size = 0x4000, scoped, tag = 'output window, operand 0, single buffered']
    %7 = vsyncpa [#allocation3], 0
    %8 = vsyncpa [#allocation6], 0
    %9 = vsyncpa [#allocation4], 0
    // Predicated region
    $region2: #{tpu_custom_call.1} parent=1 // pred_check
      _
    $region3: #{tpu_custom_call.1} parent=1 // pred_check_branch
      %11 = sbr.rel (0) target = $region5
    $region4: #{tpu_custom_call.1} parent=1 // pred_region
      %s13 = ssub.s32 512, 512
      %14 = vsyncadd [#allocation3], %s13
      %s15 = sshll.u32 [#allocation2], 4
      %s16 = int_to_ptr.vmem [resolvable:$true] %s15
      %21 = dma.hbm_to_vmem [thread:$0]  %s0, 512, %s16, [#allocation3], 64, 64, 4
    $region5: #{tpu_custom_call.1} parent=1 // pred_fallthru
      _
    // Predicated region
    $region6: #{tpu_custom_call.1} parent=1 // pred_check
      _
    $region7: #{tpu_custom_call.1} parent=1 // pred_check_branch
      %23 = sbr.rel (0) target = $region9
    $region8: #{tpu_custom_call.1} parent=1 // pred_region
      %s25 = ssub.s32 448, 448
      %26 = vsyncadd [#allocation6], %s25
      %s27 = sshll.u32 [#allocation5], 4
      %s28 = int_to_ptr.vmem [resolvable:$true] %s27
      %33 = dma.hbm_to_vmem [thread:$0]  %s1, 448, %s28, [#allocation6], 64, 64, 4
    $region9: #{tpu_custom_call.1} parent=1 // pred_fallthru
      _
    // Predicated region
    $region10: #{tpu_custom_call.1} parent=1 // pred_check
      _
    $region11: #{tpu_custom_call.1} parent=1 // pred_check_branch
      %35 = sbr.rel (0) target = $region13
    $region12: #{tpu_custom_call.1} parent=1 // pred_region
      %36 = dma.done [#allocation3], 512
    $region13: #{tpu_custom_call.1} parent=1 // pred_fallthru
      _
    // Predicated region
    $region14: #{tpu_custom_call.1} parent=1 // pred_check
      _
    $region15: #{tpu_custom_call.1} parent=1 // pred_check_branch
      %38 = sbr.rel (0) target = $region17
    $region16: #{tpu_custom_call.1} parent=1 // pred_region
      %39 = dma.done [#allocation6], 448
    $region17: #{tpu_custom_call.1} parent=1 // pred_fallthru
      _
    %v41 = vld [vmem:[#allocation2] sm:$0xf]
    %v42 = vld [vmem:[#allocation2 + $0x4] sm:$0xf]
    %v43 = vld [vmem:[#allocation2 + $0x8] sm:$0xf]
    %v44 = vld [vmem:[#allocation2 + $0xc] sm:$0xf]
    %v45 = vld [vmem:[#allocation2 + $0x10] sm:$0xf]
    %v46 = vld [vmem:[#allocation2 + $0x14] sm:$0xf]
    %v47 = vld [vmem:[#allocation2 + $0x18] sm:$0xf]
    %v48 = vld [vmem:[#allocation2 + $0x1c] sm:$0xf]
    %v49 = vld [vmem:[#allocation5] sm:$0xf]
    %v50 = vld [vmem:[#allocation5 + $0x4] sm:$0xf]
    %v51 = vld [vmem:[#allocation5 + $0x8] sm:$0xf]
    %v52 = vld [vmem:[#allocation5 + $0xc] sm:$0xf]
    %v53 = vld [vmem:[#allocation5 + $0x10] sm:$0xf]
    %v54 = vld [vmem:[#allocation5 + $0x14] sm:$0xf]
    %v55 = vld [vmem:[#allocation5 + $0x18] sm:$0x1]
    %v64 = vunpack.c.l.b16 %v41
    %v65 = vunpack.c.l.b16 %v42
    %v66 = vunpack.c.l.b16 %v43
    %v67 = vunpack.c.l.b16 %v44
    %v68 = vunpack.c.l.b16 %v45
    %v69 = vunpack.c.l.b16 %v46
    %v70 = vunpack.c.l.b16 %v47
    %v71 = vunpack.c.l.b16 %v48
    %v72 = vpack.c.b16 %v65, %v64
    %v73 = vpack.c.b16 %v67, %v66
    %v74 = vpack.c.b16 %v69, %v68
    %v75 = vpack.c.b16 %v71, %v70
    %v83 = vunpack.c.l.b16 %v49
    %v84 = vunpack.c.l.b16 %v50
    %v85 = vunpack.c.l.b16 %v51
    %v86 = vunpack.c.l.b16 %v52
    %v87 = vunpack.c.l.b16 %v53
    %v88 = vunpack.c.l.b16 %v54
    %v89 = vunpack.c.l.b16 %v55
    %v90 = vpack.c.b16 %v84, %v83
    %v91 = vpack.c.b16 %v86, %v85
    %v92 = vpack.c.b16 %v88, %v87
    %v93 = vpack.c.b16 %v89, %v89
    %vm97 = vcmask 408576
    %v99 = vsel %vm97, %v72, 0
    %v102 = vsel %vm97, %v73, 0
    %v105 = vsel %vm97, %v74, 0
    %v108 = vsel %vm97, %v75, 0
    %vm110 = vcmask 1040384
    %v112 = vsel %vm110, %v93, 0
    %114 = vmatprep.subr.bf16.mxu0 0
    %115 = vmatpush1.bf16.msra.mxu0 %v90
    %116 = vmatprep.subr.bf16.mxu0 0
    %117 = vmatpush1.bf16.msra.mxu0 %v91
    %118 = vmatprep.subr.bf16.mxu0 0
    %119 = vmatpush1.bf16.msra.mxu0 %v92
    %120 = vmatprep.subr.bf16.mxu0 0
    %121 = vmatpush1.bf16.msra.mxu0 %v112
    %122 = vmatprep.subr.bf16.mxu0 0
    %123 = vmatpush1.bf16.msra.mxu0 0
    %124 = vmatprep.subr.bf16.mxu0 0
    %125 = vmatpush1.bf16.msra.mxu0 0
    %126 = vmatprep.subr.bf16.mxu0 0
    %127 = vmatpush1.bf16.msra.mxu0 0
    %128 = vmatprep.subr.bf16.mxu0 0
    %129 = vmatpush1.bf16.msra.mxu0 0
    %130 = vmatprep.subr.bf16.mxu0 0
    %131 = vmatpush1.bf16.msra.mxu0 0
    %132 = vmatprep.subr.bf16.mxu0 0
    %133 = vmatpush1.bf16.msra.mxu0 0
    %134 = vmatprep.subr.bf16.mxu0 0
    %135 = vmatpush1.bf16.msra.mxu0 0
    %136 = vmatprep.subr.bf16.mxu0 0
    %137 = vmatpush1.bf16.msra.mxu0 0
    %138 = vmatprep.subr.bf16.mxu0 0
    %139 = vmatpush1.bf16.msra.mxu0 0
    %140 = vmatprep.subr.bf16.mxu0 0
    %141 = vmatpush1.bf16.msra.mxu0 0
    %142 = vmatprep.subr.bf16.mxu0 0
    %143 = vmatpush1.bf16.msra.mxu0 0
    %144 = vmatprep.subr.bf16.mxu0 0
    %145 = vmatpush1.bf16.msra.mxu0 0
    %146 = vmatprep.mubr.bf16.mxu0 0
    %147 = vmatmul.mubr.bf16.gmra.mrb[0].mxu0 %v99
    %v148 = vpop.f32.mrb[0].mxu0
    %v149 = vadd.f32 0.0, %v148
    %v150 = vpop.f32.mrb[0].mxu0
    %v151 = vpop.f32.mrb[0].mxu0
    %v152 = vadd.f32 0.0, %v151
    %v153 = vpop.f32.mrb[0].mxu0
    %154 = vmatprep.mubr.bf16.mxu0 0
    %155 = vmatmul.mubr.bf16.gmra.mrb[0].mxu0 %v102
    %v156 = vpop.f32.mrb[0].mxu0
    %v157 = vadd.f32 0.0, %v156
    %v158 = vpop.f32.mrb[0].mxu0
    %v159 = vpop.f32.mrb[0].mxu0
    %v160 = vadd.f32 0.0, %v159
    %v161 = vpop.f32.mrb[0].mxu0
    %162 = vmatprep.mubr.bf16.mxu0 0
    %163 = vmatmul.mubr.bf16.gmra.mrb[0].mxu0 %v105
    %v164 = vpop.f32.mrb[0].mxu0
    %v165 = vadd.f32 0.0, %v164
    %v166 = vpop.f32.mrb[0].mxu0
    %v167 = vpop.f32.mrb[0].mxu0
    %v168 = vadd.f32 0.0, %v167
    %v169 = vpop.f32.mrb[0].mxu0
    %170 = vmatprep.mubr.bf16.mxu0 0
    %171 = vmatmul.mubr.bf16.gmra.mrb[0].mxu0 %v108
    %v172 = vpop.f32.mrb[0].mxu0
    %v173 = vadd.f32 0.0, %v172
    %v174 = vpop.f32.mrb[0].mxu0
    %v175 = vpop.f32.mrb[0].mxu0
    %v176 = vadd.f32 0.0, %v175
    %v177 = vpop.f32.mrb[0].mxu0
    %178 = vdwg.mxu0
    %v179 = vpack.c.bf16 %v152, %v149
    %v180 = vpack.c.bf16 %v160, %v157
    %v181 = vpack.c.bf16 %v168, %v165
    %v182 = vpack.c.bf16 %v176, %v173
    %v187 = vunpack.c.l.b16 %v179
    %v188 = vunpack.c.h.b16 %v179
    %v189 = vunpack.c.l.b16 %v180
    %v190 = vunpack.c.h.b16 %v180
    %v191 = vunpack.c.l.b16 %v181
    %v192 = vunpack.c.h.b16 %v181
    %v193 = vunpack.c.l.b16 %v182
    %v194 = vunpack.c.h.b16 %v182
    %v195 = vpack.c.b16 %v187, %v187
    %v196 = vpack.c.b16 %v188, %v188
    %v197 = vpack.c.b16 %v189, %v189
    %v198 = vpack.c.b16 %v190, %v190
    %v199 = vpack.c.b16 %v191, %v191
    %v200 = vpack.c.b16 %v192, %v192
    %v201 = vpack.c.b16 %v193, %v193
    %v202 = vpack.c.b16 %v194, %v194
    %vm211 = vcmask 125952
    %212 = vst.msk [vmem:[#allocation7] sm:$0xf] %vm211, %v195
    %213 = vst.msk [vmem:[#allocation7 + $0x4] sm:$0xf] %vm211, %v196
    %214 = vst.msk [vmem:[#allocation7 + $0x8] sm:$0xf] %vm211, %v197
    %215 = vst.msk [vmem:[#allocation7 + $0xc] sm:$0xf] %vm211, %v198
    %216 = vst.msk [vmem:[#allocation7 + $0x10] sm:$0xf] %vm211, %v199
    %217 = vst.msk [vmem:[#allocation7 + $0x14] sm:$0xf] %vm211, %v200
    %218 = vst.msk [vmem:[#allocation7 + $0x18] sm:$0xf] %vm211, %v201
    %219 = vst.msk [vmem:[#allocation7 + $0x1c] sm:$0xf] %vm211, %v202
    // Predicated region
    $region18: #{tpu_custom_call.1} parent=1 // pred_check
      _
    $region19: #{tpu_custom_call.1} parent=1 // pred_check_branch
      %221 = sbr.rel (0) target = $region21
    $region20: #{tpu_custom_call.1} parent=1 // pred_region
      %s223 = ssub.s32 512, 512
      %224 = vsyncadd [#allocation4], %s223
      %s225 = sshll.u32 [#allocation7], 4
      %s226 = int_to_ptr.vmem [resolvable:$true] %s225
      %231 = dma.vmem_to_hbm [thread:$0]  %s226, 512, %s2, [#allocation4], 64, 64, 4
    $region21: #{tpu_custom_call.1} parent=1 // pred_fallthru
      _
    // Predicated region
    $region22: #{tpu_custom_call.1} parent=1 // pred_check
      _
    $region23: #{tpu_custom_call.1} parent=1 // pred_check_branch
      %233 = sbr.rel (0) target = $region25
    $region24: #{tpu_custom_call.1} parent=1 // pred_region
      %234 = dma.done [#allocation4], 512
    $region25: #{tpu_custom_call.1} parent=1 // pred_fallthru
      _
    %235 = vsyncpa [#allocation3], 1
    %236 = vsyncpa [#allocation6], 1
    %237 = vsyncpa [#allocation4], 1

</llo_original>
